<compile_context>
chip_gen: v7x
topology: tpu7x:2x2x1
jax: 0.10.0
libtpu: 0.0.40
codegen_flags: <defaults>
</compile_context>

<pallas_src>
import jax
import jax.numpy as jnp
from jax.experimental import pallas as pl
from jax.experimental.pallas import tpu as pltpu

LANE = 128          # TPU vreg lane width: feature dims padded to this
SUBLANE_BF16 = 16   # bf16 packs 16 rows per vreg; keep batch tiles multiples of this
MAX_TB = 512        # batch-tile cap for large batches


def _round_up(n, m):
    return ((n + m - 1) // m) * m


def _two_layer_net_kernel(x_ref, w1_ref, b1_ref, w2_ref, b2_ref, w3_ref, b3_ref, o_ref):
    # One (tb, Dp_in) batch tile; weights/biases are VMEM-resident across the grid.
    x = x_ref[...]  # bf16

    def sigmoid(z):
        # tanh lands on the EUP slot (free relative to VALU); epilogue math stays f32.
        return 0.5 * jnp.tanh(0.5 * z) + 0.5

    # Layer 1: MXU matmul (bf16 in, f32 accumulate), bias + sigmoid in f32.
    z1 = jnp.dot(x, w1_ref[...], preferred_element_type=jnp.float32) + b1_ref[...]
    a1 = sigmoid(z1).astype(jnp.bfloat16)

    # Layer 2
    z2 = jnp.dot(a1, w2_ref[...], preferred_element_type=jnp.float32) + b2_ref[...]
    a2 = sigmoid(z2).astype(jnp.bfloat16)

    # Layer 3 (no activation). Lane-dense (tb, 128) store; true D_out sliced outside.
    z3 = jnp.dot(a2, w3_ref[...], preferred_element_type=jnp.float32) + b3_ref[...]
    o_ref[...] = z3.astype(o_ref.dtype)


def make_two_layer_net(w1, b1, w2, b2, w3, b3, *, max_tb=MAX_TB, out_dtype=jnp.float32):
    """Pre-pads & bf16-casts parameters ONCE; returns a jitted forward that only pads x.

    Weights are (in, out); biases are (out,) or (1, out). Forward returns (B, D_out)
    in `out_dtype` (f32 by default; pass bf16 if the consumer tolerates it — halves
    v5e vst pressure and output HBM writeback).
    """
    D_in, H1 = w1.shape
    H2 = w2.shape[1]
    D_out = w3.shape[1]
    # Lane-align feature dims (only to 128 — padding K/N to 256 is pure zero-FLOPs).
    Dp_in, Hp1, Hp2, Dp_out = (_round_up(d, LANE) for d in (D_in, H1, H2, D_out))

    def pad2(a, rows, cols, dtype):
        a = a.reshape(1, -1) if a.ndim == 1 else a
        return jnp.pad(a, ((0, rows - a.shape[0]), (0, cols - a.shape[1]))).astype(dtype)

    # Cached padded params. Zero padding is exact: padded hidden columns produce
    # sigmoid(0)=0.5 but are annihilated by the zero-padded rows of the next weight;
    # padded output columns are exactly zero and sliced off.
    w1p = pad2(w1, Dp_in, Hp1, jnp.bfloat16)
    w2p = pad2(w2, Hp1, Hp2, jnp.bfloat16)
    w3p = pad2(w3, Hp2, Dp_out, jnp.bfloat16)
    b1p = pad2(b1, 1, Hp1, jnp.float32)
    b2p = pad2(b2, 1, Hp2, jnp.float32)
    b3p = pad2(b3, 1, Dp_out, jnp.float32)

    weight_bytes = (2 * (Dp_in * Hp1 + Hp1 * Hp2 + Hp2 * Dp_out)
                    + 4 * (Hp1 + Hp2 + Dp_out))

    def forward(x):
        B = x.shape[0]
        # Single grid step when the whole (padded) batch fits one tile; otherwise
        # ~512-row tiles. tb stays a multiple of 16 so bf16 sublane packing is dense.
        tb = min(max_tb, _round_up(B, SUBLANE_BF16))
        Bp = _round_up(B, tb)

        # Only per-call wrapper work: one pad + one cast on x.
        xp = jnp.pad(x, ((0, Bp - B), (0, Dp_in - D_in))).astype(jnp.bfloat16)

        # Explicit VMEM budget (inputs/outputs count ~2x for pipeline buffers) plus
        # headroom for in-kernel temporaries; capped at v7x's 64 MiB.
        tile_bytes = tb * (2 * Dp_in + 4 * Dp_out)            # x tile + out tile
        act_bytes = tb * (Hp1 + Hp2 + Dp_out) * 6             # f32 z + bf16 a temps
        vmem_limit = min(64 << 20,
                         2 * (tile_bytes + weight_bytes + act_bytes) + (8 << 20))

        # Weights/biases: same block every grid step -> stay resident in VMEM.
        resident = lambda a: pl.BlockSpec(a.shape, lambda i: (0, 0))

        out = pl.pallas_call(
            _two_layer_net_kernel,
            out_shape=jax.ShapeDtypeStruct((Bp, Dp_out), out_dtype),
            grid=(Bp // tb,),
            in_specs=[
                pl.BlockSpec((tb, Dp_in), lambda i: (i, 0)),   # x: tiled over batch
                resident(w1p), resident(b1p),
                resident(w2p), resident(b2p),
                resident(w3p), resident(b3p),
            ],
            out_specs=pl.BlockSpec((tb, Dp_out), lambda i: (i, 0)),
            compiler_params=pltpu.CompilerParams(
                # No-op at grid=1; shards batch tiles across TCs (v7x) for large B.
                dimension_semantics=("parallel",),
                vmem_limit_bytes=vmem_limit,
            ),
        )(xp, w1p, b1p, w2p, b2p, w3p, b3p)

        return out[:B, :D_out]

    return jax.jit(forward)


def init_linear(key, fan_in, fan_out):
    # Mimics torch.nn.Linear default init: U(-1/sqrt(fan_in), 1/sqrt(fan_in)).
    kw, kb = jax.random.split(key)
    bound = 1.0 / jnp.sqrt(jnp.float32(fan_in))
    w = jax.random.uniform(kw, (fan_in, fan_out), jnp.float32, -bound, bound)  # (in, out)
    b = jax.random.uniform(kb, (1, fan_out), jnp.float32, -bound, bound)
    return w, b


if __name__ == "__main__":
    # TwoLayerNet(D_in=32, H1=64, H2=64, D_out=16); B=64 runs as a single grid step.
    B, D_in, H1, H2, D_out = 64, 32, 64, 64, 16

    key = jax.random.PRNGKey(0)
    kx, k1, k2, k3 = jax.random.split(key, 4)

    x = jax.random.normal(kx, (B, D_in), jnp.float32)
    w1, b1 = init_linear(k1, D_in, H1)
    w2, b2 = init_linear(k2, H1, H2)
    w3, b3 = init_linear(k3, H2, D_out)

    net = make_two_layer_net(w1, b1, w2, b2, w3, b3)
    out = net(x)
    jax.block_until_ready(out)
    assert out.shape == (B, D_out)
    assert out.dtype == jnp.float32

    # Reference with the same bf16-input / f32-accumulate semantics (tight check).
    def ref_bf16(x):
        xb = x.astype(jnp.bfloat16)
        a1 = jax.nn.sigmoid(
            jnp.dot(xb, w1.astype(jnp.bfloat16), preferred_element_type=jnp.float32) + b1)
        a2 = jax.nn.sigmoid(
            jnp.dot(a1.astype(jnp.bfloat16), w2.astype(jnp.bfloat16),
                    preferred_element_type=jnp.float32) + b2)
        return jnp.dot(a2.astype(jnp.bfloat16), w3.astype(jnp.bfloat16),
                       preferred_element_type=jnp.float32) + b3

    # Full-f32 reference (loose check: bounds bf16 cast error).
    def ref_f32(x):
        a1 = jax.nn.sigmoid(x @ w1 + b1)
        a2 = jax.nn.sigmoid(a1 @ w2 + b2)
        return a2 @ w3 + b3

    assert jnp.allclose(out, ref_bf16(x), atol=2e-3, rtol=2e-3)
    assert jnp.allclose(out, ref_f32(x), atol=5e-2, rtol=5e-2)

    print("KERNEL_OK")
</pallas_src>

<mosaic_0001>
module attributes {stable_mosaic.version = 11 : i64} {
  func.func @_two_layer_net_kernel(%arg0: i32, %arg1: memref<64x128xbf16, #tpu.memory_space<vmem>>, %arg2: memref<128x128xbf16, #tpu.memory_space<vmem>>, %arg3: memref<1x128xf32, #tpu.memory_space<vmem>>, %arg4: memref<128x128xbf16, #tpu.memory_space<vmem>>, %arg5: memref<1x128xf32, #tpu.memory_space<vmem>>, %arg6: memref<128x128xbf16, #tpu.memory_space<vmem>>, %arg7: memref<1x128xf32, #tpu.memory_space<vmem>>, %arg8: memref<64x128xf32, #tpu.memory_space<vmem>>) attributes {dimension_semantics = [#tpu.dimension_semantics<parallel>], iteration_bounds = array<i64: 1>, scalar_prefetch = 0 : i64, scratch_operands = 0 : i64, tpu.core_type = #tpu.core_type<tc>, window_params = [{transform_indices = @transform_0, window_bounds = array<i64: 64, 128>}, {pipeline_mode = #tpu.pipeline_mode<synchronous>, transform_indices = @transform_1, window_bounds = array<i64: 128, 128>}, {pipeline_mode = #tpu.pipeline_mode<synchronous>, transform_indices = @transform_2, window_bounds = array<i64: 1, 128>}, {pipeline_mode = #tpu.pipeline_mode<synchronous>, transform_indices = @transform_3, window_bounds = array<i64: 128, 128>}, {pipeline_mode = #tpu.pipeline_mode<synchronous>, transform_indices = @transform_4, window_bounds = array<i64: 1, 128>}, {pipeline_mode = #tpu.pipeline_mode<synchronous>, transform_indices = @transform_5, window_bounds = array<i64: 128, 128>}, {pipeline_mode = #tpu.pipeline_mode<synchronous>, transform_indices = @transform_6, window_bounds = array<i64: 1, 128>}, {transform_indices = @transform_7, window_bounds = array<i64: 64, 128>}]} {
    %c0 = arith.constant 0 : index
    %c0_0 = arith.constant 0 : index
    %0 = vector.load %arg1[%c0, %c0_0] : memref<64x128xbf16, #tpu.memory_space<vmem>>, vector<64x128xbf16>
    %c0_1 = arith.constant 0 : index
    %c0_2 = arith.constant 0 : index
    %1 = vector.load %arg2[%c0_1, %c0_2] : memref<128x128xbf16, #tpu.memory_space<vmem>>, vector<128x128xbf16>
    %cst = arith.constant dense<0.000000e+00> : vector<64x128xf32>
    %2 = tpu.matmul %0, %1, %cst {dimension_numbers = #tpu.dot_dimension_numbers<[1], [0], [0], [1], [0, 0, 1, 1], [], []>} : vector<64x128xbf16>, vector<128x128xbf16>, vector<64x128xf32> -> vector<64x128xf32>
    %c0_3 = arith.constant 0 : index
    %c0_4 = arith.constant 0 : index
    %3 = vector.load %arg3[%c0_3, %c0_4] : memref<1x128xf32, #tpu.memory_space<vmem>>, vector<1x128xf32>
    %4 = vector.broadcast %3 : vector<1x128xf32> to vector<64x128xf32>
    %5 = arith.addf %2, %4 : vector<64x128xf32>
    %cst_5 = arith.constant 5.000000e-01 : f32
    %6 = vector.broadcast %cst_5 : f32 to vector<64x128xf32>
    %7 = arith.mulf %6, %5 : vector<64x128xf32>
    %8 = math.tanh %7 : vector<64x128xf32>
    %cst_6 = arith.constant 5.000000e-01 : f32
    %9 = vector.broadcast %cst_6 : f32 to vector<64x128xf32>
    %10 = arith.mulf %9, %8 : vector<64x128xf32>
    %cst_7 = arith.constant 5.000000e-01 : f32
    %11 = vector.broadcast %cst_7 : f32 to vector<64x128xf32>
    %12 = arith.addf %10, %11 : vector<64x128xf32>
    %13 = arith.truncf %12 : vector<64x128xf32> to vector<64x128xbf16>
    %c0_8 = arith.constant 0 : index
    %c0_9 = arith.constant 0 : index
    %14 = vector.load %arg4[%c0_8, %c0_9] : memref<128x128xbf16, #tpu.memory_space<vmem>>, vector<128x128xbf16>
    %cst_10 = arith.constant dense<0.000000e+00> : vector<64x128xf32>
    %15 = tpu.matmul %13, %14, %cst_10 {dimension_numbers = #tpu.dot_dimension_numbers<[1], [0], [0], [1], [0, 0, 1, 1], [], []>} : vector<64x128xbf16>, vector<128x128xbf16>, vector<64x128xf32> -> vector<64x128xf32>
    %c0_11 = arith.constant 0 : index
    %c0_12 = arith.constant 0 : index
    %16 = vector.load %arg5[%c0_11, %c0_12] : memref<1x128xf32, #tpu.memory_space<vmem>>, vector<1x128xf32>
    %17 = vector.broadcast %16 : vector<1x128xf32> to vector<64x128xf32>
    %18 = arith.addf %15, %17 : vector<64x128xf32>
    %cst_13 = arith.constant 5.000000e-01 : f32
    %19 = vector.broadcast %cst_13 : f32 to vector<64x128xf32>
    %20 = arith.mulf %19, %18 : vector<64x128xf32>
    %21 = math.tanh %20 : vector<64x128xf32>
    %cst_14 = arith.constant 5.000000e-01 : f32
    %22 = vector.broadcast %cst_14 : f32 to vector<64x128xf32>
    %23 = arith.mulf %22, %21 : vector<64x128xf32>
    %cst_15 = arith.constant 5.000000e-01 : f32
    %24 = vector.broadcast %cst_15 : f32 to vector<64x128xf32>
    %25 = arith.addf %23, %24 : vector<64x128xf32>
    %26 = arith.truncf %25 : vector<64x128xf32> to vector<64x128xbf16>
    %c0_16 = arith.constant 0 : index
    %c0_17 = arith.constant 0 : index
    %27 = vector.load %arg6[%c0_16, %c0_17] : memref<128x128xbf16, #tpu.memory_space<vmem>>, vector<128x128xbf16>
    %cst_18 = arith.constant dense<0.000000e+00> : vector<64x128xf32>
    %28 = tpu.matmul %26, %27, %cst_18 {dimension_numbers = #tpu.dot_dimension_numbers<[1], [0], [0], [1], [0, 0, 1, 1], [], []>} : vector<64x128xbf16>, vector<128x128xbf16>, vector<64x128xf32> -> vector<64x128xf32>
    %c0_19 = arith.constant 0 : index
    %c0_20 = arith.constant 0 : index
    %29 = vector.load %arg7[%c0_19, %c0_20] : memref<1x128xf32, #tpu.memory_space<vmem>>, vector<1x128xf32>
    %30 = vector.broadcast %29 : vector<1x128xf32> to vector<64x128xf32>
    %31 = arith.addf %28, %30 : vector<64x128xf32>
    %c0_21 = arith.constant 0 : index
    %c0_22 = arith.constant 0 : index
    %32 = vector.load %arg8[%c0_21, %c0_22] : memref<64x128xf32, #tpu.memory_space<vmem>>, vector<64x128xf32>
    tpu.vector_store %arg8[%c0_21, %c0_22], %31 {strides = array<i32>} : memref<64x128xf32, #tpu.memory_space<vmem>>, vector<64x128xf32>,
    return
  }
  func.func @transform_0(%arg0: i32) -> (i32, i32) {
    %c0_i32 = arith.constant 0 : i32
    %c0_i32_0 = arith.constant 0 : i32
    return %arg0, %c0_i32 : i32, i32
  }
  func.func @transform_1(%arg0: i32) -> (i32, i32) {
    %c0_i32 = arith.constant 0 : i32
    %c0_i32_0 = arith.constant 0 : i32
    %c0_i32_1 = arith.constant 0 : i32
    return %c0_i32, %c0_i32_0 : i32, i32
  }
  func.func @transform_2(%arg0: i32) -> (i32, i32) {
    %c0_i32 = arith.constant 0 : i32
    %c0_i32_0 = arith.constant 0 : i32
    %c0_i32_1 = arith.constant 0 : i32
    return %c0_i32, %c0_i32_0 : i32, i32
  }
  func.func @transform_3(%arg0: i32) -> (i32, i32) {
    %c0_i32 = arith.constant 0 : i32
    %c0_i32_0 = arith.constant 0 : i32
    %c0_i32_1 = arith.constant 0 : i32
    return %c0_i32, %c0_i32_0 : i32, i32
  }
  func.func @transform_4(%arg0: i32) -> (i32, i32) {
    %c0_i32 = arith.constant 0 : i32
    %c0_i32_0 = arith.constant 0 : i32
    %c0_i32_1 = arith.constant 0 : i32
    return %c0_i32, %c0_i32_0 : i32, i32
  }
  func.func @transform_5(%arg0: i32) -> (i32, i32) {
    %c0_i32 = arith.constant 0 : i32
    %c0_i32_0 = arith.constant 0 : i32
    %c0_i32_1 = arith.constant 0 : i32
    return %c0_i32, %c0_i32_0 : i32, i32
  }
  func.func @transform_6(%arg0: i32) -> (i32, i32) {
    %c0_i32 = arith.constant 0 : i32
    %c0_i32_0 = arith.constant 0 : i32
    %c0_i32_1 = arith.constant 0 : i32
    return %c0_i32, %c0_i32_0 : i32, i32
  }
  func.func @transform_7(%arg0: i32) -> (i32, i32) {
    %c0_i32 = arith.constant 0 : i32
    %c0_i32_0 = arith.constant 0 : i32
    return %arg0, %c0_i32 : i32, i32
  }
}

</mosaic_0001>

<llo_original>
// kernel: forward.1
$region0: #{forward.1}
  #allocation0 [shape = 'u32[]', space=smem, size = 0x4, offset = 0x4, fixed_abs, tag = 'smem constant byte address 0x4 - core index']
  #allocation1 [shape = 'u32[144,128]{1,0:T(1,128)}', space=vmem, size = 0x12000, scoped, tag = 'internal scratch']
  %s0 = inlined_call_operand.vmem [shape: bf16[64,128], index: 0, kind: input, shape index: {}]
  %s1 = inlined_call_operand.hbm [shape: bf16[128,128], index: 1, kind: input, shape index: {}]
  %s2 = inlined_call_operand.vmem [shape: f32[1,128], index: 2, kind: input, shape index: {}]
  %s3 = inlined_call_operand.vmem [shape: bf16[128,128], index: 3, kind: input, shape index: {}]
  %s4 = inlined_call_operand.vmem [shape: f32[1,128], index: 4, kind: input, shape index: {}]
  %s5 = inlined_call_operand.vmem [shape: bf16[128,128], index: 5, kind: input, shape index: {}]
  %s6 = inlined_call_operand.vmem [shape: f32[1,128], index: 6, kind: input, shape index: {}]
  %s7 = inlined_call_operand.vmem [shape: f32[64,128], index: 7, kind: output, shape index: {}]
  %s8 = sld [smem:[#allocation0]]
  $region42: #{forward.1} parent=0
    _
  %s10 = ssub.s32 1, %s8
  %s11 = scalar_select 0, %s10, %s8
  $region1: #{forward.1} parent=0
    #allocation2 [shape = 'u8[32768]{0}', space=vmem, size = 0x8000, scoped, tag = 'input window, operand 1, single buffered']
    #allocation3 [shape = 's32[1]{0}', space=sflag, size = 0x4, scoped, tag = 'scoped memory for forward.1']
    %12 = vsyncpa [#allocation3], 0
    // Predicated region
    $region2: #{forward.1} parent=1 // pred_check
      _
    $region3: #{forward.1} parent=1 // pred_check_branch
      %14 = sbr.rel (0) target = $region5
    $region4: #{forward.1} parent=1 // pred_region
      _
    $region5: #{forward.1} parent=1 // pred_fallthru
      _
    // Predicated region
    $region6: #{forward.1} parent=1 // pred_check
      _
    $region7: #{forward.1} parent=1 // pred_check_branch
      %16 = sbr.rel (0) target = $region9
    $region8: #{forward.1} parent=1 // pred_region
      %s18 = ssub.s32 1024, 1024
      %19 = vsyncadd [#allocation3], %s18
      %s20 = sshll.u32 [#allocation2], 4
      %s21 = int_to_ptr.vmem [resolvable:$true] %s20
      %26 = dma.hbm_to_vmem [thread:$0]  %s1, 1024, %s21, [#allocation3], 64, 64, 4
    $region9: #{forward.1} parent=1 // pred_fallthru
      _
    // Predicated region
    $region10: #{forward.1} parent=1 // pred_check
      _
    $region11: #{forward.1} parent=1 // pred_check_branch
      %28 = sbr.rel (0) target = $region13
    $region12: #{forward.1} parent=1 // pred_region
      _
    $region13: #{forward.1} parent=1 // pred_fallthru
      _
    // Predicated region
    $region14: #{forward.1} parent=1 // pred_check
      _
    $region15: #{forward.1} parent=1 // pred_check_branch
      %30 = sbr.rel (0) target = $region17
    $region16: #{forward.1} parent=1 // pred_region
      _
    $region17: #{forward.1} parent=1 // pred_fallthru
      _
    // Predicated region
    $region18: #{forward.1} parent=1 // pred_check
      _
    $region19: #{forward.1} parent=1 // pred_check_branch
      %32 = sbr.rel (0) target = $region21
    $region20: #{forward.1} parent=1 // pred_region
      _
    $region21: #{forward.1} parent=1 // pred_fallthru
      _
    // Predicated region
    $region22: #{forward.1} parent=1 // pred_check
      _
    $region23: #{forward.1} parent=1 // pred_check_branch
      %34 = sbr.rel (0) target = $region25
    $region24: #{forward.1} parent=1 // pred_region
      _
    $region25: #{forward.1} parent=1 // pred_fallthru
      _
    // Predicated region
    $region26: #{forward.1} parent=1 // pred_check
      _
    $region27: #{forward.1} parent=1 // pred_check_branch
      %36 = sbr.rel (0) target = $region29
    $region28: #{forward.1} parent=1 // pred_region
      _
    $region29: #{forward.1} parent=1 // pred_fallthru
      _
    // Predicated region
    $region30: #{forward.1} parent=1 // pred_check
      _
    $region31: #{forward.1} parent=1 // pred_check_branch
      %38 = sbr.rel (0) target = $region33
    $region32: #{forward.1} parent=1 // pred_region
      %39 = dma.done [#allocation3], 1024
    $region33: #{forward.1} parent=1 // pred_fallthru
      _
    %v41 = vld [vmem:[%s0] sm:$0xf]
    %v42 = vld [vmem:[%s0 + $0x4] sm:$0xf]
    %v43 = vld [vmem:[%s0 + $0x8] sm:$0xf]
    %v44 = vld [vmem:[%s0 + $0xc] sm:$0xf]
    %v45 = vld [vmem:[%s0 + $0x10] sm:$0xf]
    %v46 = vld [vmem:[%s0 + $0x14] sm:$0xf]
    %v47 = vld [vmem:[%s0 + $0x18] sm:$0xf]
    %v48 = vld [vmem:[%s0 + $0x1c] sm:$0xf]
    %v49 = vld [vmem:[#allocation2] sm:$0xf]
    %v50 = vld [vmem:[#allocation2 + $0x4] sm:$0xf]
    %v51 = vld [vmem:[#allocation2 + $0x8] sm:$0xf]
    %v52 = vld [vmem:[#allocation2 + $0xc] sm:$0xf]
    %v53 = vld [vmem:[#allocation2 + $0x10] sm:$0xf]
    %v54 = vld [vmem:[#allocation2 + $0x14] sm:$0xf]
    %v55 = vld [vmem:[#allocation2 + $0x18] sm:$0xf]
    %v56 = vld [vmem:[#allocation2 + $0x1c] sm:$0xf]
    %v57 = vld [vmem:[#allocation2 + $0x20] sm:$0xf]
    %v58 = vld [vmem:[#allocation2 + $0x24] sm:$0xf]
    %v59 = vld [vmem:[#allocation2 + $0x28] sm:$0xf]
    %v60 = vld [vmem:[#allocation2 + $0x2c] sm:$0xf]
    %v61 = vld [vmem:[#allocation2 + $0x30] sm:$0xf]
    %v62 = vld [vmem:[#allocation2 + $0x34] sm:$0xf]
    %v63 = vld [vmem:[#allocation2 + $0x38] sm:$0xf]
    %v64 = vld [vmem:[#allocation2 + $0x3c] sm:$0xf]
    %v65 = vld [vmem:[%s2] sm:$0x1]
    %v67 = vlaneseq
    %v68 = vshrl.u32 %v67, 7
    %v69 = vsub.s32 0, %v68
    %v70 = vrot.slane %v65, %v69
    %v80 = vunpack.c.l.b16 %v41
    %v81 = vunpack.c.l.b16 %v42
    %v82 = vunpack.c.l.b16 %v43
    %v83 = vunpack.c.l.b16 %v44
    %v84 = vunpack.c.l.b16 %v45
    %v85 = vunpack.c.l.b16 %v46
    %v86 = vunpack.c.l.b16 %v47
    %v87 = vunpack.c.l.b16 %v48
    %v88 = vpack.c.b16 %v81, %v80
    %v89 = vpack.c.b16 %v83, %v82
    %v90 = vpack.c.b16 %v85, %v84
    %v91 = vpack.c.b16 %v87, %v86
    %v112 = vunpack.c.l.b16 %v49
    %v113 = vunpack.c.l.b16 %v50
    %v114 = vunpack.c.l.b16 %v51
    %v115 = vunpack.c.l.b16 %v52
    %v116 = vunpack.c.l.b16 %v53
    %v117 = vunpack.c.l.b16 %v54
    %v118 = vunpack.c.l.b16 %v55
    %v119 = vunpack.c.l.b16 %v56
    %v120 = vunpack.c.l.b16 %v57
    %v121 = vunpack.c.l.b16 %v58
    %v122 = vunpack.c.l.b16 %v59
    %v123 = vunpack.c.l.b16 %v60
    %v124 = vunpack.c.l.b16 %v61
    %v125 = vunpack.c.l.b16 %v62
    %v126 = vunpack.c.l.b16 %v63
    %v127 = vunpack.c.l.b16 %v64
    %v128 = vpack.c.b16 %v113, %v112
    %v129 = vpack.c.b16 %v115, %v114
    %v130 = vpack.c.b16 %v117, %v116
    %v131 = vpack.c.b16 %v119, %v118
    %v132 = vpack.c.b16 %v121, %v120
    %v133 = vpack.c.b16 %v123, %v122
    %v134 = vpack.c.b16 %v125, %v124
    %v135 = vpack.c.b16 %v127, %v126
    %144 = vmatprep.subr.bf16.mxu0 0
    %145 = vmatpush1.bf16.msra.mxu0 %v128
    %146 = vmatprep.subr.bf16.mxu0 0
    %147 = vmatpush1.bf16.msra.mxu0 %v129
    %148 = vmatprep.subr.bf16.mxu0 0
    %149 = vmatpush1.bf16.msra.mxu0 %v130
    %150 = vmatprep.subr.bf16.mxu0 0
    %151 = vmatpush1.bf16.msra.mxu0 %v131
    %152 = vmatprep.subr.bf16.mxu0 0
    %153 = vmatpush1.bf16.msra.mxu0 %v132
    %154 = vmatprep.subr.bf16.mxu0 0
    %155 = vmatpush1.bf16.msra.mxu0 %v133
    %156 = vmatprep.subr.bf16.mxu0 0
    %157 = vmatpush1.bf16.msra.mxu0 %v134
    %158 = vmatprep.subr.bf16.mxu0 0
    %159 = vmatpush1.bf16.msra.mxu0 %v135
    %160 = vmatprep.subr.bf16.mxu0 0
    %161 = vmatpush1.bf16.msra.mxu0 0
    %162 = vmatprep.subr.bf16.mxu0 0
    %163 = vmatpush1.bf16.msra.mxu0 0
    %164 = vmatprep.subr.bf16.mxu0 0
    %165 = vmatpush1.bf16.msra.mxu0 0
    %166 = vmatprep.subr.bf16.mxu0 0
    %167 = vmatpush1.bf16.msra.mxu0 0
    %168 = vmatprep.subr.bf16.mxu0 0
    %169 = vmatpush1.bf16.msra.mxu0 0
    %170 = vmatprep.subr.bf16.mxu0 0
    %171 = vmatpush1.bf16.msra.mxu0 0
    %172 = vmatprep.subr.bf16.mxu0 0
    %173 = vmatpush1.bf16.msra.mxu0 0
    %174 = vmatprep.subr.bf16.mxu0 0
    %175 = vmatpush1.bf16.msra.mxu0 0
    %176 = vmatprep.mubr.bf16.mxu0 0
    %177 = vmatmul.mubr.bf16.gmra.mrb[0].mxu0 %v88
    %v178 = vpop.f32.mrb[0].mxu0
    %v179 = vadd.f32 %v70, %v178
    %v180 = vpop.f32.mrb[0].mxu0
    %v181 = vpop.f32.mrb[0].mxu0
    %v182 = vadd.f32 %v70, %v181
    %v183 = vpop.f32.mrb[0].mxu0
    %184 = vmatprep.mubr.bf16.mxu0 0
    %185 = vmatmul.mubr.bf16.gmra.mrb[0].mxu0 %v89
    %v186 = vpop.f32.mrb[0].mxu0
    %v187 = vadd.f32 %v70, %v186
    %v188 = vpop.f32.mrb[0].mxu0
    %v189 = vpop.f32.mrb[0].mxu0
    %v190 = vadd.f32 %v70, %v189
    %v191 = vpop.f32.mrb[0].mxu0
    %192 = vmatprep.mubr.bf16.mxu0 0
    %193 = vmatmul.mubr.bf16.gmra.mrb[0].mxu0 %v90
    %v194 = vpop.f32.mrb[0].mxu0
    %v195 = vadd.f32 %v70, %v194
    %v196 = vpop.f32.mrb[0].mxu0
    %v197 = vpop.f32.mrb[0].mxu0
    %v198 = vadd.f32 %v70, %v197
    %v199 = vpop.f32.mrb[0].mxu0
    %200 = vmatprep.mubr.bf16.mxu0 0
    %201 = vmatmul.mubr.bf16.gmra.mrb[0].mxu0 %v91
    %v202 = vpop.f32.mrb[0].mxu0
    %v203 = vadd.f32 %v70, %v202
    %v204 = vpop.f32.mrb[0].mxu0
    %v205 = vpop.f32.mrb[0].mxu0
    %v206 = vadd.f32 %v70, %v205
    %v207 = vpop.f32.mrb[0].mxu0
    %208 = vdwg.mxu0
    %v209 = vmul.f32 %v179, 0.5
    %v210 = vmul.f32 %v182, 0.5
    %v211 = vmul.f32 %v187, 0.5
    %v212 = vmul.f32 %v190, 0.5
    %v213 = vmul.f32 %v195, 0.5
    %v214 = vmul.f32 %v198, 0.5
    %v215 = vmul.f32 %v203, 0.5
    %v216 = vmul.f32 %v206, 0.5
    %v217 = vtanh.pop %v209
    %v218 = vtanh.pop %v210
    %v219 = vtanh.pop %v211
    %v220 = vtanh.pop %v212
    %v221 = vtanh.pop %v213
    %v222 = vtanh.pop %v214
    %v223 = vtanh.pop %v215
    %v224 = vtanh.pop %v216
    %v225 = vmul.f32 %v217, 0.5
    %v226 = vmul.f32 %v218, 0.5
    %v227 = vmul.f32 %v219, 0.5
    %v228 = vmul.f32 %v220, 0.5
    %v229 = vmul.f32 %v221, 0.5
    %v230 = vmul.f32 %v222, 0.5
    %v231 = vmul.f32 %v223, 0.5
    %v232 = vmul.f32 %v224, 0.5
    %v233 = vadd.f32 %v225, 0.5
    %v234 = vadd.f32 %v226, 0.5
    %v235 = vadd.f32 %v227, 0.5
    %v236 = vadd.f32 %v228, 0.5
    %v237 = vadd.f32 %v229, 0.5
    %v238 = vadd.f32 %v230, 0.5
    %v239 = vadd.f32 %v231, 0.5
    %v240 = vadd.f32 %v232, 0.5
    %v241 = vpack.c.bf16 %v234, %v233
    %v242 = vpack.c.bf16 %v236, %v235
    %v243 = vpack.c.bf16 %v238, %v237
    %v244 = vpack.c.bf16 %v240, %v239
    %v245 = vld [vmem:[%s3] sm:$0xf]
    %v246 = vld [vmem:[%s3 + $0x4] sm:$0xf]
    %v247 = vld [vmem:[%s3 + $0x8] sm:$0xf]
    %v248 = vld [vmem:[%s3 + $0xc] sm:$0xf]
    %v249 = vld [vmem:[%s3 + $0x10] sm:$0xf]
    %v250 = vld [vmem:[%s3 + $0x14] sm:$0xf]
    %v251 = vld [vmem:[%s3 + $0x18] sm:$0xf]
    %v252 = vld [vmem:[%s3 + $0x1c] sm:$0xf]
    %v253 = vld [vmem:[%s3 + $0x20] sm:$0xf]
    %v254 = vld [vmem:[%s3 + $0x24] sm:$0xf]
    %v255 = vld [vmem:[%s3 + $0x28] sm:$0xf]
    %v256 = vld [vmem:[%s3 + $0x2c] sm:$0xf]
    %v257 = vld [vmem:[%s3 + $0x30] sm:$0xf]
    %v258 = vld [vmem:[%s3 + $0x34] sm:$0xf]
    %v259 = vld [vmem:[%s3 + $0x38] sm:$0xf]
    %v260 = vld [vmem:[%s3 + $0x3c] sm:$0xf]
    %v261 = vld [vmem:[%s4] sm:$0x1]
    %v263 = vlaneseq
    %v264 = vshrl.u32 %v263, 7
    %v265 = vsub.s32 0, %v264
    %v266 = vrot.slane %v261, %v265
    %v284 = vunpack.c.l.b16 %v245
    %v285 = vunpack.c.l.b16 %v246
    %v286 = vunpack.c.l.b16 %v247
    %v287 = vunpack.c.l.b16 %v248
    %v288 = vunpack.c.l.b16 %v249
    %v289 = vunpack.c.l.b16 %v250
    %v290 = vunpack.c.l.b16 %v251
    %v291 = vunpack.c.l.b16 %v252
    %v292 = vunpack.c.l.b16 %v253
    %v293 = vunpack.c.l.b16 %v254
    %v294 = vunpack.c.l.b16 %v255
    %v295 = vunpack.c.l.b16 %v256
    %v296 = vunpack.c.l.b16 %v257
    %v297 = vunpack.c.l.b16 %v258
    %v298 = vunpack.c.l.b16 %v259
    %v299 = vunpack.c.l.b16 %v260
    %v300 = vpack.c.b16 %v285, %v284
    %v301 = vpack.c.b16 %v287, %v286
    %v302 = vpack.c.b16 %v289, %v288
    %v303 = vpack.c.b16 %v291, %v290
    %v304 = vpack.c.b16 %v293, %v292
    %v305 = vpack.c.b16 %v295, %v294
    %v306 = vpack.c.b16 %v297, %v296
    %v307 = vpack.c.b16 %v299, %v298
    %316 = vmatprep.subr.bf16.mxu0 0
    %317 = vmatpush1.bf16.msra.mxu0 %v300
    %318 = vmatprep.subr.bf16.mxu0 0
    %319 = vmatpush1.bf16.msra.mxu0 %v301
    %320 = vmatprep.subr.bf16.mxu0 0
    %321 = vmatpush1.bf16.msra.mxu0 %v302
    %322 = vmatprep.subr.bf16.mxu0 0
    %323 = vmatpush1.bf16.msra.mxu0 %v303
    %324 = vmatprep.subr.bf16.mxu0 0
    %325 = vmatpush1.bf16.msra.mxu0 %v304
    %326 = vmatprep.subr.bf16.mxu0 0
    %327 = vmatpush1.bf16.msra.mxu0 %v305
    %328 = vmatprep.subr.bf16.mxu0 0
    %329 = vmatpush1.bf16.msra.mxu0 %v306
    %330 = vmatprep.subr.bf16.mxu0 0
    %331 = vmatpush1.bf16.msra.mxu0 %v307
    %332 = vmatprep.subr.bf16.mxu0 0
    %333 = vmatpush1.bf16.msra.mxu0 0
    %334 = vmatprep.subr.bf16.mxu0 0
    %335 = vmatpush1.bf16.msra.mxu0 0
    %336 = vmatprep.subr.bf16.mxu0 0
    %337 = vmatpush1.bf16.msra.mxu0 0
    %338 = vmatprep.subr.bf16.mxu0 0
    %339 = vmatpush1.bf16.msra.mxu0 0
    %340 = vmatprep.subr.bf16.mxu0 0
    %341 = vmatpush1.bf16.msra.mxu0 0
    %342 = vmatprep.subr.bf16.mxu0 0
    %343 = vmatpush1.bf16.msra.mxu0 0
    %344 = vmatprep.subr.bf16.mxu0 0
    %345 = vmatpush1.bf16.msra.mxu0 0
    %346 = vmatprep.subr.bf16.mxu0 0
    %347 = vmatpush1.bf16.msra.mxu0 0
    %348 = vmatprep.mubr.bf16.mxu0 0
    %349 = vmatmul.mubr.bf16.gmra.mrb[0].mxu0 %v241
    %v350 = vpop.f32.mrb[0].mxu0
    %v351 = vadd.f32 %v266, %v350
    %v352 = vpop.f32.mrb[0].mxu0
    %v353 = vpop.f32.mrb[0].mxu0
    %v354 = vadd.f32 %v266, %v353
    %v355 = vpop.f32.mrb[0].mxu0
    %356 = vmatprep.mubr.bf16.mxu0 0
    %357 = vmatmul.mubr.bf16.gmra.mrb[0].mxu0 %v242
    %v358 = vpop.f32.mrb[0].mxu0
    %v359 = vadd.f32 %v266, %v358
    %v360 = vpop.f32.mrb[0].mxu0
    %v361 = vpop.f32.mrb[0].mxu0
    %v362 = vadd.f32 %v266, %v361
    %v363 = vpop.f32.mrb[0].mxu0
    %364 = vmatprep.mubr.bf16.mxu0 0
    %365 = vmatmul.mubr.bf16.gmra.mrb[0].mxu0 %v243
    %v366 = vpop.f32.mrb[0].mxu0
    %v367 = vadd.f32 %v266, %v366
    %v368 = vpop.f32.mrb[0].mxu0
    %v369 = vpop.f32.mrb[0].mxu0
    %v370 = vadd.f32 %v266, %v369
    %v371 = vpop.f32.mrb[0].mxu0
    %372 = vmatprep.mubr.bf16.mxu0 0
    %373 = vmatmul.mubr.bf16.gmra.mrb[0].mxu0 %v244
    %v374 = vpop.f32.mrb[0].mxu0
    %v375 = vadd.f32 %v266, %v374
    %v376 = vpop.f32.mrb[0].mxu0
    %v377 = vpop.f32.mrb[0].mxu0
    %v378 = vadd.f32 %v266, %v377
    %v379 = vpop.f32.mrb[0].mxu0
    %380 = vdwg.mxu0
    %v381 = vmul.f32 %v351, 0.5
    %v382 = vmul.f32 %v354, 0.5
    %v383 = vmul.f32 %v359, 0.5
    %v384 = vmul.f32 %v362, 0.5
    %v385 = vmul.f32 %v367, 0.5
    %v386 = vmul.f32 %v370, 0.5
    %v387 = vmul.f32 %v375, 0.5
    %v388 = vmul.f32 %v378, 0.5
    %v389 = vtanh.pop %v381
    %v390 = vtanh.pop %v382
    %v391 = vtanh.pop %v383
    %v392 = vtanh.pop %v384
    %v393 = vtanh.pop %v385
    %v394 = vtanh.pop %v386
    %v395 = vtanh.pop %v387
    %v396 = vtanh.pop %v388
    %v397 = vmul.f32 %v389, 0.5
    %v398 = vmul.f32 %v390, 0.5
    %v399 = vmul.f32 %v391, 0.5
    %v400 = vmul.f32 %v392, 0.5
    %v401 = vmul.f32 %v393, 0.5
    %v402 = vmul.f32 %v394, 0.5
    %v403 = vmul.f32 %v395, 0.5
    %v404 = vmul.f32 %v396, 0.5
    %v405 = vadd.f32 %v397, 0.5
    %v406 = vadd.f32 %v398, 0.5
    %v407 = vadd.f32 %v399, 0.5
    %v408 = vadd.f32 %v400, 0.5
    %v409 = vadd.f32 %v401, 0.5
    %v410 = vadd.f32 %v402, 0.5
    %v411 = vadd.f32 %v403, 0.5
    %v412 = vadd.f32 %v404, 0.5
    %v413 = vpack.c.bf16 %v406, %v405
    %v414 = vpack.c.bf16 %v408, %v407
    %v415 = vpack.c.bf16 %v410, %v409
    %v416 = vpack.c.bf16 %v412, %v411
    %v417 = vld [vmem:[%s5] sm:$0xf]
    %v418 = vld [vmem:[%s5 + $0x4] sm:$0xf]
    %v419 = vld [vmem:[%s5 + $0x8] sm:$0xf]
    %v420 = vld [vmem:[%s5 + $0xc] sm:$0xf]
    %v421 = vld [vmem:[%s5 + $0x10] sm:$0xf]
    %v422 = vld [vmem:[%s5 + $0x14] sm:$0xf]
    %v423 = vld [vmem:[%s5 + $0x18] sm:$0xf]
    %v424 = vld [vmem:[%s5 + $0x1c] sm:$0xf]
    %v425 = vld [vmem:[%s5 + $0x20] sm:$0xf]
    %v426 = vld [vmem:[%s5 + $0x24] sm:$0xf]
    %v427 = vld [vmem:[%s5 + $0x28] sm:$0xf]
    %v428 = vld [vmem:[%s5 + $0x2c] sm:$0xf]
    %v429 = vld [vmem:[%s5 + $0x30] sm:$0xf]
    %v430 = vld [vmem:[%s5 + $0x34] sm:$0xf]
    %v431 = vld [vmem:[%s5 + $0x38] sm:$0xf]
    %v432 = vld [vmem:[%s5 + $0x3c] sm:$0xf]
    %v433 = vld [vmem:[%s6] sm:$0x1]
    %v435 = vlaneseq
    %v436 = vshrl.u32 %v435, 7
    %v437 = vsub.s32 0, %v436
    %v438 = vrot.slane %v433, %v437
    %v456 = vunpack.c.l.b16 %v417
    %v457 = vunpack.c.l.b16 %v418
    %v458 = vunpack.c.l.b16 %v419
    %v459 = vunpack.c.l.b16 %v420
    %v460 = vunpack.c.l.b16 %v421
    %v461 = vunpack.c.l.b16 %v422
    %v462 = vunpack.c.l.b16 %v423
    %v463 = vunpack.c.l.b16 %v424
    %v464 = vunpack.c.l.b16 %v425
    %v465 = vunpack.c.l.b16 %v426
    %v466 = vunpack.c.l.b16 %v427
    %v467 = vunpack.c.l.b16 %v428
    %v468 = vunpack.c.l.b16 %v429
    %v469 = vunpack.c.l.b16 %v430
    %v470 = vunpack.c.l.b16 %v431
    %v471 = vunpack.c.l.b16 %v432
    %v472 = vpack.c.b16 %v457, %v456
    %v473 = vpack.c.b16 %v459, %v458
    %v474 = vpack.c.b16 %v461, %v460
    %v475 = vpack.c.b16 %v463, %v462
    %v476 = vpack.c.b16 %v465, %v464
    %v477 = vpack.c.b16 %v467, %v466
    %v478 = vpack.c.b16 %v469, %v468
    %v479 = vpack.c.b16 %v471, %v470
    %488 = vmatprep.subr.bf16.mxu0 0
    %489 = vmatpush1.bf16.msra.mxu0 %v472
    %490 = vmatprep.subr.bf16.mxu0 0
    %491 = vmatpush1.bf16.msra.mxu0 %v473
    %492 = vmatprep.subr.bf16.mxu0 0
    %493 = vmatpush1.bf16.msra.mxu0 %v474
    %494 = vmatprep.subr.bf16.mxu0 0
    %495 = vmatpush1.bf16.msra.mxu0 %v475
    %496 = vmatprep.subr.bf16.mxu0 0
    %497 = vmatpush1.bf16.msra.mxu0 %v476
    %498 = vmatprep.subr.bf16.mxu0 0
    %499 = vmatpush1.bf16.msra.mxu0 %v477
    %500 = vmatprep.subr.bf16.mxu0 0
    %501 = vmatpush1.bf16.msra.mxu0 %v478
    %502 = vmatprep.subr.bf16.mxu0 0
    %503 = vmatpush1.bf16.msra.mxu0 %v479
    %504 = vmatprep.subr.bf16.mxu0 0
    %505 = vmatpush1.bf16.msra.mxu0 0
    %506 = vmatprep.subr.bf16.mxu0 0
    %507 = vmatpush1.bf16.msra.mxu0 0
    %508 = vmatprep.subr.bf16.mxu0 0
    %509 = vmatpush1.bf16.msra.mxu0 0
    %510 = vmatprep.subr.bf16.mxu0 0
    %511 = vmatpush1.bf16.msra.mxu0 0
    %512 = vmatprep.subr.bf16.mxu0 0
    %513 = vmatpush1.bf16.msra.mxu0 0
    %514 = vmatprep.subr.bf16.mxu0 0
    %515 = vmatpush1.bf16.msra.mxu0 0
    %516 = vmatprep.subr.bf16.mxu0 0
    %517 = vmatpush1.bf16.msra.mxu0 0
    %518 = vmatprep.subr.bf16.mxu0 0
    %519 = vmatpush1.bf16.msra.mxu0 0
    %520 = vmatprep.mubr.bf16.mxu0 0
    %521 = vmatmul.mubr.bf16.gmra.mrb[0].mxu0 %v413
    %v522 = vpop.f32.mrb[0].mxu0
    %v523 = vadd.f32 %v438, %v522
    %v524 = vpop.f32.mrb[0].mxu0
    %v525 = vpop.f32.mrb[0].mxu0
    %v526 = vadd.f32 %v438, %v525
    %v527 = vpop.f32.mrb[0].mxu0
    %528 = vmatprep.mubr.bf16.mxu0 0
    %529 = vmatmul.mubr.bf16.gmra.mrb[0].mxu0 %v414
    %v530 = vpop.f32.mrb[0].mxu0
    %v531 = vadd.f32 %v438, %v530
    %v532 = vpop.f32.mrb[0].mxu0
    %v533 = vpop.f32.mrb[0].mxu0
    %v534 = vadd.f32 %v438, %v533
    %v535 = vpop.f32.mrb[0].mxu0
    %536 = vmatprep.mubr.bf16.mxu0 0
    %537 = vmatmul.mubr.bf16.gmra.mrb[0].mxu0 %v415
    %v538 = vpop.f32.mrb[0].mxu0
    %v539 = vadd.f32 %v438, %v538
    %v540 = vpop.f32.mrb[0].mxu0
    %v541 = vpop.f32.mrb[0].mxu0
    %v542 = vadd.f32 %v438, %v541
    %v543 = vpop.f32.mrb[0].mxu0
    %544 = vmatprep.mubr.bf16.mxu0 0
    %545 = vmatmul.mubr.bf16.gmra.mrb[0].mxu0 %v416
    %v546 = vpop.f32.mrb[0].mxu0
    %v547 = vadd.f32 %v438, %v546
    %v548 = vpop.f32.mrb[0].mxu0
    %v549 = vpop.f32.mrb[0].mxu0
    %v550 = vadd.f32 %v438, %v549
    %v551 = vpop.f32.mrb[0].mxu0
    %552 = vdwg.mxu0
    %553 = vst [vmem:[%s7] sm:$0xff] %v523
    %554 = vst [vmem:[%s7 + $0x8] sm:$0xff] %v526
    %555 = vst [vmem:[%s7 + $0x10] sm:$0xff] %v531
    %556 = vst [vmem:[%s7 + $0x18] sm:$0xff] %v534
    %557 = vst [vmem:[%s7 + $0x20] sm:$0xff] %v539
    %558 = vst [vmem:[%s7 + $0x28] sm:$0xff] %v542
    %559 = vst [vmem:[%s7 + $0x30] sm:$0xff] %v547
    %560 = vst [vmem:[%s7 + $0x38] sm:$0xff] %v550
    // Predicated region
    $region34: #{forward.1} parent=1 // pred_check
      _
    $region35: #{forward.1} parent=1 // pred_check_branch
      %562 = sbr.rel (0) target = $region37
    $region36: #{forward.1} parent=1 // pred_region
      _
    $region37: #{forward.1} parent=1 // pred_fallthru
      _
    // Predicated region
    $region38: #{forward.1} parent=1 // pred_check
      _
    $region39: #{forward.1} parent=1 // pred_check_branch
      %564 = sbr.rel (0) target = $region41
    $region40: #{forward.1} parent=1 // pred_region
      _
    $region41: #{forward.1} parent=1 // pred_fallthru
      _
    %565 = vsyncpa [#allocation3], 1

</llo_original>
